<compile_context>
chip_gen: v7x
topology: tpu7x:2x2x1
jax: 0.10.0
libtpu: 0.0.40
codegen_flags: <defaults>
</compile_context>

<pallas_src>
import functools

import jax
import jax.numpy as jnp
from jax import lax
from jax.experimental import pallas as pl
from jax.experimental.pallas import tpu as pltpu


def _masked_nll_kernel(logits_ref, targets_ref, out_ref, *,
                       masked_tokens, n_rows, tm):
    i = pl.program_id(0)

    # --- stable log-sum-exp over the class (lane) axis ---
    x = logits_ref[...].astype(jnp.float32)                      # (tm, C)
    m = jnp.max(x, axis=-1, keepdims=True)                       # (tm, 1)
    lse = jnp.log(jnp.sum(jnp.exp(x - m), axis=-1, keepdims=True))  # (tm, 1)

    # --- gather logit of the target class per row (no logp materialized) ---
    tgt = targets_ref[...]                                       # (tm, 1) int32
    lane = lax.broadcasted_iota(jnp.int32, x.shape, 1)
    picked_x = jnp.sum(jnp.where(lane == tgt, x, 0.0),
                       axis=-1, keepdims=True)                   # (tm, 1)

    # loss = -log_softmax(x)[tgt] = (m + lse) - x[tgt]
    loss = (m + lse) - picked_x                                  # (tm, 1)

    # --- zero out rows whose target is a masked token, and padded rows ---
    mask = jnp.zeros_like(tgt, dtype=jnp.bool_)
    for t in masked_tokens:
        mask = mask | (tgt == jnp.int32(t))
    row = lax.broadcasted_iota(jnp.int32, tgt.shape, 0) + i * tm
    mask = mask | (row >= n_rows)
    loss = jnp.where(mask, 0.0, loss)

    # --- emit this block's partial sum (broadcast into a lane-dense tile) ---
    s = jnp.sum(loss)
    out_ref[...] = jnp.broadcast_to(s, out_ref.shape)


def _choose_tm(n, c, itemsize, *, target_bytes=4 << 20, max_tm=4096):
    """Rows per block: ~target_bytes of logits per step, sublane-aligned."""
    sub = 16 if itemsize == 2 else 8          # bf16 packs 16 rows per vreg
    tm = (target_bytes // max(c * itemsize, 1)) // sub * sub
    tm = max(sub, min(tm, max_tm))
    # Do not pad far beyond N for small inputs.
    n_round = ((n + sub - 1) // sub) * sub
    return min(tm, n_round)


def masked_nll(logits, targets, masked_tokens):
    """logits: [N, C] float; targets: [N] int; masked_tokens: tuple of ints."""
    N, C = logits.shape
    itemsize = jnp.dtype(logits.dtype).itemsize
    tm = _choose_tm(N, C, itemsize)

    # Pad rows so the grid is exact; padded rows are masked inside the kernel.
    num_blocks = pl.cdiv(N, tm)
    n_pad = num_blocks * tm
    if n_pad != N:
        logits = jnp.pad(logits, ((0, n_pad - N), (0, 0)))
        targets = jnp.pad(targets, (0, n_pad - N))
    targets2d = targets.astype(jnp.int32).reshape(n_pad, 1)

    # Scoped-VMEM budget: double-buffered logits + targets blocks + headroom.
    block_bytes = tm * C * itemsize + tm * 4
    vmem_limit = int(min(max(2 * block_bytes + (4 << 20), 16 << 20), 48 << 20))

    kernel = functools.partial(
        _masked_nll_kernel,
        masked_tokens=tuple(int(t) for t in masked_tokens),
        n_rows=N,
        tm=tm,
    )

    partials = pl.pallas_call(
        kernel,
        # One (8, 128) lane-dense partial-sum tile per block -> disjoint output
        # blocks, so the grid can be marked "parallel" (megacore on v7x).
        out_shape=jax.ShapeDtypeStruct((num_blocks, 8, 128), jnp.float32),
        grid_spec=pltpu.PrefetchScalarGridSpec(
            num_scalar_prefetch=0,
            grid=(num_blocks,),
            in_specs=[
                pl.BlockSpec((tm, C), lambda i: (i, 0)),
                pl.BlockSpec((tm, 1), lambda i: (i, 0)),
            ],
            out_specs=pl.BlockSpec((1, 8, 128), lambda i: (i, 0, 0)),
        ),
        compiler_params=pltpu.CompilerParams(
            dimension_semantics=("parallel",),
            vmem_limit_bytes=vmem_limit,
        ),
    )(logits, targets2d)

    # Final reduction + mean (denominator = N, masked rows count as zeros).
    return jnp.sum(partials[:, 0, 0]) / jnp.float32(N)


def masked_nll_ref(logits, targets, masked_tokens):
    """Pure-JAX reference matching the PyTorch module."""
    logp = jax.nn.log_softmax(logits.astype(jnp.float32), axis=-1)
    loss = -jnp.take_along_axis(logp, targets[:, None].astype(jnp.int32),
                                axis=-1)[:, 0]
    mask = jnp.isin(targets, jnp.asarray(masked_tokens, dtype=targets.dtype))
    loss = jnp.where(mask, 0.0, loss)
    return jnp.mean(loss)


if __name__ == "__main__":
    key = jax.random.PRNGKey(0)
    masked_tokens = (0, 5)              # deterministic "buffer" from __init__

    # Case 1: small, divisible shapes.
    k1, k2 = jax.random.split(key)
    N, C = 16, 32
    logits = jax.random.normal(k1, (N, C), dtype=jnp.float32)
    targets = jax.random.randint(k2, (N,), 0, C, dtype=jnp.int32)
    out = jax.block_until_ready(masked_nll(logits, targets, masked_tokens))
    ref = masked_nll_ref(logits, targets, masked_tokens)
    assert jnp.allclose(out, ref, atol=1e-5, rtol=1e-5), (out, ref)

    # Case 2: N not a multiple of the sublane tile (exercises padding path).
    k3, k4 = jax.random.split(k1)
    N2, C2 = 50, 96
    logits2 = jax.random.normal(k3, (N2, C2), dtype=jnp.float32)
    targets2 = jax.random.randint(k4, (N2,), 0, C2, dtype=jnp.int32)
    out2 = jax.block_until_ready(masked_nll(logits2, targets2, masked_tokens))
    ref2 = masked_nll_ref(logits2, targets2, masked_tokens)
    assert jnp.allclose(out2, ref2, atol=1e-5, rtol=1e-5), (out2, ref2)

    print("KERNEL_OK")
</pallas_src>

<mosaic_0001>
module attributes {stable_mosaic.version = 11 : i64} {
  func.func @_masked_nll_kernel(%arg0: i32, %arg1: memref<16x32xf32, #tpu.memory_space<vmem>>, %arg2: memref<16x1xi32, #tpu.memory_space<vmem>>, %arg3: memref<1x8x128xf32, #tpu.memory_space<vmem>>) attributes {dimension_semantics = [#tpu.dimension_semantics<parallel>], iteration_bounds = array<i64: 1>, scalar_prefetch = 0 : i64, scratch_operands = 0 : i64, tpu.core_type = #tpu.core_type<tc>, window_params = [{transform_indices = @transform_0, window_bounds = array<i64: 16, 32>}, {transform_indices = @transform_1, window_bounds = array<i64: 16, 1>}, {transform_indices = @transform_2, window_bounds = array<i64: 1, 8, 128>}]} {
    %c0 = arith.constant 0 : index
    %c0_0 = arith.constant 0 : index
    %0 = vector.load %arg1[%c0, %c0_0] : memref<16x32xf32, #tpu.memory_space<vmem>>, vector<16x32xf32>
    %cst = arith.constant dense<0xFF800000> : vector<16xf32>
    %1 = vector.multi_reduction <maximumf>, %0, %cst [1] : vector<16x32xf32> to vector<16xf32>
    %2 = vector.shape_cast %1 : vector<16xf32> to vector<16x1xf32>
    %3 = vector.broadcast %2 : vector<16x1xf32> to vector<16x32xf32>
    %4 = arith.subf %0, %3 : vector<16x32xf32>
    %5 = math.exp %4 : vector<16x32xf32>
    %cst_1 = arith.constant dense<0.000000e+00> : vector<16xf32>
    %6 = vector.multi_reduction <add>, %5, %cst_1 [1] : vector<16x32xf32> to vector<16xf32>
    %7 = vector.shape_cast %6 : vector<16xf32> to vector<16x1xf32>
    %8 = math.log %7 : vector<16x1xf32>
    %c0_2 = arith.constant 0 : index
    %c0_3 = arith.constant 0 : index
    %9 = vector.load %arg2[%c0_2, %c0_3] : memref<16x1xi32, #tpu.memory_space<vmem>>, vector<16x1xi32>
    %10 = tpu.iota {dimensions = array<i32: 1>} : vector<16x32xi32>
    %11 = vector.broadcast %9 : vector<16x1xi32> to vector<16x32xi32>
    %12 = arith.cmpi eq, %10, %11 : vector<16x32xi32>
    %cst_4 = arith.constant 0.000000e+00 : f32
    %13 = vector.broadcast %cst_4 : f32 to vector<16x32xf32>
    %14 = arith.select %12, %0, %13 : vector<16x32xi1>, vector<16x32xf32>
    %cst_5 = arith.constant dense<0.000000e+00> : vector<16xf32>
    %15 = vector.multi_reduction <add>, %14, %cst_5 [1] : vector<16x32xf32> to vector<16xf32>
    %16 = vector.shape_cast %15 : vector<16xf32> to vector<16x1xf32>
    %17 = arith.addf %2, %8 : vector<16x1xf32>
    %18 = arith.subf %17, %16 : vector<16x1xf32>
    %false = arith.constant false
    %19 = vector.broadcast %false : i1 to vector<16x1xi1>
    %c0_i32 = arith.constant 0 : i32
    %20 = vector.broadcast %c0_i32 : i32 to vector<16x1xi32>
    %21 = arith.cmpi eq, %9, %20 : vector<16x1xi32>
    %22 = arith.ori %19, %21 : vector<16x1xi1>
    %c5_i32 = arith.constant 5 : i32
    %23 = vector.broadcast %c5_i32 : i32 to vector<16x1xi32>
    %24 = arith.cmpi eq, %9, %23 : vector<16x1xi32>
    %25 = arith.ori %22, %24 : vector<16x1xi1>
    %26 = tpu.iota {dimensions = array<i32: 0>} : vector<16x1xi32>
    %c16_i32 = arith.constant 16 : i32
    %27 = arith.muli %arg0, %c16_i32 : i32
    %28 = vector.broadcast %27 : i32 to vector<16x1xi32>
    %29 = arith.addi %26, %28 : vector<16x1xi32>
    %c16_i32_6 = arith.constant 16 : i32
    %30 = vector.broadcast %c16_i32_6 : i32 to vector<16x1xi32>
    %31 = arith.cmpi sge, %29, %30 : vector<16x1xi32>
    %32 = arith.ori %25, %31 : vector<16x1xi1>
    %cst_7 = arith.constant 0.000000e+00 : f32
    %33 = vector.broadcast %cst_7 : f32 to vector<16x1xf32>
    %34 = arith.select %32, %33, %18 : vector<16x1xi1>, vector<16x1xf32>
    %35 = vector.shape_cast %34 : vector<16x1xf32> to vector<1x16x1xf32>
    %cst_8 = arith.constant dense<0.000000e+00> : vector<1xf32>
    %36 = vector.multi_reduction <add>, %35, %cst_8 [1, 2] : vector<1x16x1xf32> to vector<1xf32>
    %37 = vector.shape_cast %36 : vector<1xf32> to vector<1x1x1xf32>
    %38 = vector.extract %37[0, 0, 0] : f32 from vector<1x1x1xf32>
    %39 = vector.broadcast %38 : f32 to vector<1x8x128xf32>
    %c0_9 = arith.constant 0 : index
    %c0_10 = arith.constant 0 : index
    %c0_11 = arith.constant 0 : index
    %40 = vector.load %arg3[%c0_9, %c0_10, %c0_11] : memref<1x8x128xf32, #tpu.memory_space<vmem>>, vector<1x8x128xf32>
    tpu.vector_store %arg3[%c0_9, %c0_10, %c0_11], %39 {strides = array<i32>} : memref<1x8x128xf32, #tpu.memory_space<vmem>>, vector<1x8x128xf32>,
    return
  }
  func.func @transform_0(%arg0: i32) -> (i32, i32) {
    %c0_i32 = arith.constant 0 : i32
    %c0_i32_0 = arith.constant 0 : i32
    return %arg0, %c0_i32 : i32, i32
  }
  func.func @transform_1(%arg0: i32) -> (i32, i32) {
    %c0_i32 = arith.constant 0 : i32
    %c0_i32_0 = arith.constant 0 : i32
    return %arg0, %c0_i32 : i32, i32
  }
  func.func @transform_2(%arg0: i32) -> (i32, i32, i32) {
    %c0_i32 = arith.constant 0 : i32
    %c0_i32_0 = arith.constant 0 : i32
    %c0_i32_1 = arith.constant 0 : i32
    return %arg0, %c0_i32, %c0_i32_0 : i32, i32, i32
  }
}

</mosaic_0001>

<llo_original>
// kernel: tpu_custom_call.1
$region0: #{tpu_custom_call.1}
  #allocation0 [shape = 'u32[]', space=smem, size = 0x4, offset = 0x4, fixed_abs, tag = 'smem constant byte address 0x4 - core index']
  #allocation1 [shape = 'u32[144,128]{1,0:T(1,128)}', space=vmem, size = 0x12000, scoped, tag = 'internal scratch']
  %s0 = inlined_call_operand.vmem [shape: f32[16,32], index: 0, kind: input, shape index: {}]
  %s1 = inlined_call_operand.vmem [shape: s32[16,1], index: 1, kind: input, shape index: {}]
  %s2 = inlined_call_operand.hbm [shape: f32[1,8,128], index: 2, kind: output, shape index: {}]
  %s3 = sld [smem:[#allocation0]]
  $region18: #{tpu_custom_call.1} parent=0
    _
  %s5 = ssub.s32 1, %s3
  %s6 = scalar_select 0, %s5, %s3
  $region1: #{tpu_custom_call.1} parent=0
    #allocation2 [shape = 'u8[4096]{0}', space=vmem, size = 0x1000, scoped, tag = 'output window, operand 0, single buffered']
    #allocation3 [shape = 's32[1]{0}', space=sflag, size = 0x4, scoped, tag = 'scoped memory for tpu_custom_call.1']
    %7 = vsyncpa [#allocation3], 0
    // Predicated region
    $region2: #{tpu_custom_call.1} parent=1 // pred_check
      _
    $region3: #{tpu_custom_call.1} parent=1 // pred_check_branch
      %9 = sbr.rel (0) target = $region5
    $region4: #{tpu_custom_call.1} parent=1 // pred_region
      _
    $region5: #{tpu_custom_call.1} parent=1 // pred_fallthru
      _
    // Predicated region
    $region6: #{tpu_custom_call.1} parent=1 // pred_check
      _
    $region7: #{tpu_custom_call.1} parent=1 // pred_check_branch
      %11 = sbr.rel (0) target = $region9
    $region8: #{tpu_custom_call.1} parent=1 // pred_region
      _
    $region9: #{tpu_custom_call.1} parent=1 // pred_fallthru
      _
    %v12 = vld [vmem:[%s0] sm:$0xff]
    %v13 = vld [vmem:[%s0 + $0x8] sm:$0xff]
    %vm14 = vcmask 261120
    %v15 = vsel %vm14, %v12, -inf
    %16 = vmax.xlane.f32.xlu0 %v15
    %v17 = vpop.xlane.xlu0 %16
    %v18 = vsel %vm14, %v13, -inf
    %19 = vmax.xlane.f32.xlu0 %v18
    %v20 = vpop.xlane.xlu0 %19
    %v21 = vsub.f32 %v12, %v17
    %v22 = vsub.f32 %v13, %v20
    %v23 = vmul.f32 %v21, 1.442695
    %v24 = vpow.pop %v23
    %v25 = vmul.f32 %v22, 1.442695
    %v26 = vpow.pop %v25
    %v27 = vsel %vm14, %v24, 0.0
    %28 = vadd.xlane.f32.xlu0 %v27
    %v29 = vpop.xlane.xlu0 %28
    %v30 = vsel %vm14, %v26, 0.0
    %31 = vadd.xlane.f32.xlu0 %v30
    %v32 = vpop.xlane.xlu0 %31
    %v33 = vlog2.pop %v29
    %v34 = vmul.f32 %v33, 0.6931472
    %v35 = vlog2.pop %v32
    %v36 = vmul.f32 %v35, 0.6931472
    %v37 = vld [vmem:[%s1] sm:$0xff]
    %v38 = vld [vmem:[%s1 + $0x8] sm:$0xff]
    %v39 = vlaneseq
    %v40 = vand.u32 %v39, 127
    %41 = vset.pattern.permute.xlu0 0
    %42 = vperm.xlu0 %41, %v37
    %v43 = vpop.permute.xlu0 %42
    %44 = vset.pattern.permute.xlu0 0
    %45 = vperm.xlu0 %44, %v38
    %v46 = vpop.permute.xlu0 %45
    %vm47 = vcmp.eq.s32.totalorder %v40, %v43
    %vm48 = vcmp.eq.s32.totalorder %v40, %v46
    %v49 = vsel %vm47, %v12, 0.0
    %v50 = vsel %vm48, %v13, 0.0
    %v51 = vsel %vm14, %v49, 0.0
    %52 = vadd.xlane.f32.xlu0 %v51
    %v53 = vpop.xlane.xlu0 %52
    %v54 = vsel %vm14, %v50, 0.0
    %55 = vadd.xlane.f32.xlu0 %v54
    %v56 = vpop.xlane.xlu0 %55
    %v57 = vadd.f32 %v17, %v34
    %v58 = vadd.f32 %v20, %v36
    %v59 = vsub.f32 %v57, %v53
    %v60 = vsub.f32 %v58, %v56
    %vm61 = vcmp.eq.s32.totalorder %v37, 0
    %vm62 = vcmp.eq.s32.totalorder %v38, 0
    %vm63 = vcmp.eq.s32.totalorder %v37, 5
    %vm64 = vcmp.eq.s32.totalorder %v38, 5
    %vm65 = vmor %vm61, %vm63
    %vm66 = vmor %vm62, %vm64
    %v67 = vlaneseq
    %v68 = vshrl.u32 %v67, 7
    %v69 = vadd.s32 %v68, 8
    %s70 = smul.u32 0, 16
    %v71 = vstv %s70
    %v72 = vadd.s32 %v68, %v71
    %v73 = vadd.s32 %v69, %v71
    %vm74 = vcmp.ge.s32.totalorder %v72, 16
    %vm75 = vcmp.ge.s32.totalorder %v73, 16
    %vm76 = vmor %vm65, %vm74
    %vm77 = vmor %vm66, %vm75
    %v78 = vsel %vm76, 0.0, %v59
    %v79 = vsel %vm77, 0.0, %v60
    %vm80 = vcmask 7168
    %v81 = vsel %vm80, %v78, 0.0
    %v82 = vsel %vm80, %v79, 0.0
    %v83 = vadd.f32 %v81, %v82
    %84 = vadd.xlane.f32.xlu0 %v83
    %v85 = vpop.xlane.xlu0 %84
    %v86 = vrot.slane %v85, 4
    %v87 = vadd.f32 %v85, %v86
    %v88 = vrot.slane %v87, 2
    %v89 = vadd.f32 %v87, %v88
    %v90 = vrot.slane %v89, 1
    %v91 = vadd.f32 %v89, %v90
    %s92 = vtos %v91
    %v93 = vstv %s92
    %94 = vst [vmem:[#allocation2] sm:$0xff] %v93
    // Predicated region
    $region10: #{tpu_custom_call.1} parent=1 // pred_check
      _
    $region11: #{tpu_custom_call.1} parent=1 // pred_check_branch
      %96 = sbr.rel (0) target = $region13
    $region12: #{tpu_custom_call.1} parent=1 // pred_region
      %s98 = ssub.s32 128, 128
      %99 = vsyncadd [#allocation3], %s98
      %s101 = sshll.u32 [#allocation2], 4
      %s102 = int_to_ptr.vmem [resolvable:$true] %s101
      %104 = dma.vmem_to_hbm [thread:$0]  %s102, 128, %s2, [#allocation3]
    $region13: #{tpu_custom_call.1} parent=1 // pred_fallthru
      _
    // Predicated region
    $region14: #{tpu_custom_call.1} parent=1 // pred_check
      _
    $region15: #{tpu_custom_call.1} parent=1 // pred_check_branch
      %106 = sbr.rel (0) target = $region17
    $region16: #{tpu_custom_call.1} parent=1 // pred_region
      %107 = dma.done [#allocation3], 128
    $region17: #{tpu_custom_call.1} parent=1 // pred_fallthru
      _
    %108 = vsyncpa [#allocation3], 1

</llo_original>
